<compile_context>
chip_gen: v6e
topology: v6e:2x2x1
jax: 0.10.0
libtpu: 0.0.40
codegen_flags: <defaults>
</compile_context>

<pallas_src>
import jax
import jax.numpy as jnp
from jax.experimental import pallas as pl
from jax.experimental.pallas import tpu as pltpu


# --------------------------------------------------------------------------- #
# Kernels
# --------------------------------------------------------------------------- #
def _mlp_resident_kernel(x_ref, w1_ref, b1_ref, w2_ref, b2_ref, o_ref):
    """Whole MLP per row tile; W1/W2/b1/b2 resident across the row grid."""
    x = x_ref[...].astype(w1_ref.dtype)                       # in-kernel cast (VPU)
    h = jnp.dot(x, w1_ref[...], preferred_element_type=jnp.float32)
    h = jnp.maximum(h + b1_ref[...], 0.0)                     # bias + ReLU in f32
    # Dropout(0.1): identity in eval mode.
    y = jnp.dot(h.astype(w2_ref.dtype), w2_ref[...],
                preferred_element_type=jnp.float32)
    y = jnp.maximum(y + b2_ref[...], 0.0)                     # bias + ReLU in f32
    # Dropout(0.1): identity in eval mode.
    o_ref[...] = y.astype(o_ref.dtype)


def _mlp_chunked_kernel(x_ref, w1_ref, b1_ref, w2_ref, b2_ref, o_ref, acc_ref):
    """Hidden-dim chunked: grid = (row_tiles, hidden_chunks); acc is f32 scratch."""
    c = pl.program_id(1)

    @pl.when(c == 0)
    def _():
        acc_ref[...] = jnp.zeros_like(acc_ref)

    x = x_ref[...].astype(w1_ref.dtype)
    h = jnp.dot(x, w1_ref[...], preferred_element_type=jnp.float32)
    h = jnp.maximum(h + b1_ref[...], 0.0)                     # exact: per-column ReLU
    acc_ref[...] += jnp.dot(h.astype(w2_ref.dtype), w2_ref[...],
                            preferred_element_type=jnp.float32)

    @pl.when(c == pl.num_programs(1) - 1)
    def _():
        # Dropout(0.1): identity in eval mode (both layers).
        o_ref[...] = jnp.maximum(acc_ref[...] + b2_ref[...], 0.0).astype(o_ref.dtype)


# --------------------------------------------------------------------------- #
# Helpers
# --------------------------------------------------------------------------- #
def _round_up(n, m):
    return (n + m - 1) // m * m


def _vmem_capacity_bytes():
    try:
        return int(pltpu.get_tpu_info().vmem_capacity_bytes)
    except Exception:
        return 64 << 20  # conservative (v7x per-TC); only affects layout choice


def _const_spec(shape, index_map):
    """Constant-index block (weights/biases): single-buffer to save VMEM."""
    try:
        return pl.BlockSpec(shape, index_map, pipeline_mode=pl.Buffered(1))
    except TypeError:  # jax without the pipeline_mode kwarg (construction-time)
        return pl.BlockSpec(shape, index_map)


def _choose_tm(m, target=256):
    """Row tile: multiple of 16 (bf16 packing), <= target, >= ~4 grid steps."""
    if m <= target:
        return m                                   # single block == full row dim (legal)
    steps = max(4, -(-m // target))                # >=4 steps so v7x TCs get >=2 each
    return min(target, _round_up(-(-m // steps), 16))


# --------------------------------------------------------------------------- #
# Param preparation (one-time: cast + lane-pad, hoisted out of forward)
# --------------------------------------------------------------------------- #
def prepare_mlp_params(w1, b1, w2, b2, *, matmul_dtype=jnp.bfloat16):
    """Pad feature dims to multiples of 128 (zeros: exact) and cast weights once."""
    in_dim, hid_dim = w1.shape
    out_dim = w2.shape[1]
    in_p, hid_p, out_p = (_round_up(d, 128) for d in (in_dim, hid_dim, out_dim))
    w1_p = jnp.pad(w1.astype(matmul_dtype),
                   ((0, in_p - in_dim), (0, hid_p - hid_dim)))
    w2_p = jnp.pad(w2.astype(matmul_dtype),
                   ((0, hid_p - hid_dim), (0, out_p - out_dim)))
    b1_p = jnp.pad(b1.astype(jnp.float32), (0, hid_p - hid_dim)).reshape(1, hid_p)
    b2_p = jnp.pad(b2.astype(jnp.float32), (0, out_p - out_dim)).reshape(1, out_p)
    return dict(w1=w1_p, b1=b1_p, w2=w2_p, b2=b2_p,
                in_dim=in_dim, hid_dim=hid_dim, out_dim=out_dim)


# --------------------------------------------------------------------------- #
# Forward wrapper
# --------------------------------------------------------------------------- #
def mlp_forward(x, params, *, out_dtype=None, tm=None,
                force_chunked=False, chunk=None):
    """x: (..., in_dim) -> (..., out_dim), fused 2-layer MLP (eval-mode dropout)."""
    w1_p, b1_p, w2_p, b2_p = params["w1"], params["b1"], params["w2"], params["b2"]
    in_dim, out_dim = params["in_dim"], params["out_dim"]
    in_p, hid_p = w1_p.shape
    out_p = w2_p.shape[1]
    out_dtype = out_dtype or x.dtype               # optionally bf16 to halve writeback

    itm = jnp.dtype(w1_p.dtype).itemsize
    x_it = jnp.dtype(x.dtype).itemsize
    o_it = jnp.dtype(out_dtype).itemsize

    orig_shape = x.shape
    x2d = x.reshape(-1, in_dim)
    m = x2d.shape[0]
    # Fast path: no copy of x at all when in_dim is already lane-aligned.
    x_in = x2d if in_p == in_dim else jnp.pad(x2d, ((0, 0), (0, in_p - in_dim)))

    if tm is None:
        tm = _choose_tm(m)
    tm = min(tm, m)

    cap = _vmem_capacity_bytes()
    budget = min(int(0.8 * cap), cap - (8 << 20))  # leave compiler-scratch headroom
    headroom = 2 << 20

    def resident_need(tm_):
        return ((in_p * hid_p + hid_p * out_p) * itm        # W1+W2 single-buffered
                + (hid_p + out_p) * 4                        # b1+b2 single-buffered
                + 2 * tm_ * in_p * x_it                      # x tile (double-buffered)
                + 2 * tm_ * out_p * o_it                     # out tile (double-buffered)
                + tm_ * hid_p * (4 + itm)                    # h f32 + bf16 copy
                + tm_ * out_p * 4)                           # y f32

    def chunked_need(tm_, tc_):
        return (2 * (in_p * tc_ + tc_ * out_p) * itm         # W1/W2 chunks (double-buf)
                + 2 * tc_ * 4 + out_p * 4                    # b1 chunk + b2
                + 2 * tm_ * in_p * x_it
                + 2 * tm_ * out_p * o_it
                + tm_ * tc_ * (4 + itm)                      # h chunk f32 + bf16 copy
                + 2 * tm_ * out_p * 4)                       # acc scratch + y f32

    use_chunked = force_chunked or resident_need(tm) > budget

    if not use_chunked:
        need = resident_need(tm)
        grid_rows = pl.cdiv(m, tm)
        grid = (grid_rows,)
        in_specs = [
            pl.BlockSpec((tm, in_p), lambda i: (i, 0)),
            _const_spec((in_p, hid_p), lambda i: (0, 0)),
            _const_spec((1, hid_p), lambda i: (0, 0)),
            _const_spec((hid_p, out_p), lambda i: (0, 0)),
            _const_spec((1, out_p), lambda i: (0, 0)),
        ]
        out_specs = pl.BlockSpec((tm, out_p), lambda i: (i, 0))
        scratch = ()
        kernel = _mlp_resident_kernel
        dims_sem = ("parallel",)
        w_reads = 1
    else:
        if chunk is not None:
            tc = chunk
            assert tc % 128 == 0 and hid_p % tc == 0, "chunk must divide padded hidden dim"
        else:
            n128 = hid_p // 128
            candidates = [d * 128 for d in range(n128, 0, -1) if n128 % d == 0]
            tc = None
            while tc is None:
                for c in candidates:
                    if chunked_need(tm, c) <= budget:
                        tc = c
                        break
                if tc is None:
                    new_tm = max(16, (tm // 2) // 16 * 16)
                    if new_tm >= tm or new_tm > m:
                        tc = 128      # best effort; rely on compiler headroom
                    else:
                        tm = new_tm
        need = chunked_need(tm, tc)
        grid_rows = pl.cdiv(m, tm)
        grid = (grid_rows, hid_p // tc)
        in_specs = [
            pl.BlockSpec((tm, in_p), lambda i, c: (i, 0)),   # revisited across c
            pl.BlockSpec((in_p, tc), lambda i, c: (0, c)),
            pl.BlockSpec((1, tc), lambda i, c: (0, c)),
            pl.BlockSpec((tc, out_p), lambda i, c: (c, 0)),
            _const_spec((1, out_p), lambda i, c: (0, 0)),
        ]
        out_specs = pl.BlockSpec((tm, out_p), lambda i, c: (i, 0))
        scratch = (pltpu.VMEM((tm, out_p), jnp.float32),)
        kernel = _mlp_chunked_kernel
        dims_sem = ("parallel", "arbitrary")
        w_reads = grid_rows

    # Advisory cost estimate for XLA's scheduler.
    m_eff = grid_rows * tm
    flops = 2 * m_eff * (in_p * hid_p + hid_p * out_p)
    bytes_accessed = (m * in_p * x_it
                      + w_reads * (in_p * hid_p + hid_p * out_p) * itm
                      + (hid_p + out_p) * 4
                      + m * out_p * o_it)
    cost = pl.CostEstimate(flops=int(flops), transcendentals=0,
                           bytes_accessed=int(bytes_accessed))

    # Always set the scoped-VMEM limit from the real footprint (v5e default is
    # only 16 MiB); keep it below physical capacity with headroom.
    vmem_limit = int(min(max(need + headroom, 32 << 20), cap - (4 << 20)))
    compiler_params = pltpu.CompilerParams(
        dimension_semantics=dims_sem, vmem_limit_bytes=vmem_limit)

    out = pl.pallas_call(
        kernel,
        out_shape=jax.ShapeDtypeStruct((m, out_p), out_dtype),
        grid_spec=pltpu.PrefetchScalarGridSpec(
            num_scalar_prefetch=0,
            grid=grid,
            in_specs=in_specs,
            out_specs=out_specs,
            scratch_shapes=scratch),
        compiler_params=compiler_params,
        cost_estimate=cost,
    )(x_in, w1_p, b1_p, w2_p, b2_p)

    if out_p != out_dim:
        out = out[:, :out_dim]
    return out.reshape(*orig_shape[:-1], out_dim)


# --------------------------------------------------------------------------- #
# Reference & init
# --------------------------------------------------------------------------- #
def mlp_reference(x, w1, b1, w2, b2, matmul_dtype=jnp.float32):
    """Pure-JAX reference (eval-mode dropout = identity), same cast scheme."""
    h = jnp.dot(x.astype(matmul_dtype), w1.astype(matmul_dtype),
                preferred_element_type=jnp.float32) + b1.astype(jnp.float32)
    h = jnp.maximum(h, 0.0)
    y = jnp.dot(h.astype(matmul_dtype), w2.astype(matmul_dtype),
                preferred_element_type=jnp.float32) + b2.astype(jnp.float32)
    y = jnp.maximum(y, 0.0)
    return y.astype(x.dtype)


def init_mlp_params(key, in_dim, hidden_dim, out_dim, dtype=jnp.float32):
    """Deterministic init mimicking nn.Linear's uniform(-1/sqrt(fan_in), ...)."""
    k1, k2, k3, k4 = jax.random.split(key, 4)
    lim1 = 1.0 / jnp.sqrt(in_dim)
    lim2 = 1.0 / jnp.sqrt(hidden_dim)
    # Stored as (in, out) so forward is x @ W (equivalent to torch x @ W.T).
    w1 = jax.random.uniform(k1, (in_dim, hidden_dim), dtype, -lim1, lim1)
    b1 = jax.random.uniform(k2, (hidden_dim,), dtype, -lim1, lim1)
    w2 = jax.random.uniform(k3, (hidden_dim, out_dim), dtype, -lim2, lim2)
    b2 = jax.random.uniform(k4, (out_dim,), dtype, -lim2, lim2)
    return w1, b1, w2, b2


if __name__ == "__main__":
    key = jax.random.PRNGKey(0)
    kx, kp, kx2, kp2 = jax.random.split(key, 4)

    # --- Small MLP, shapes consistent with the PyTorch module -------------- #
    batch, seq = 2, 8
    in_dim, hidden_dim, out_dim = 16, 32, 16
    x = jax.random.normal(kx, (batch, seq, in_dim), jnp.float32)
    w1, b1, w2, b2 = init_mlp_params(kp, in_dim, hidden_dim, out_dim)
    params = prepare_mlp_params(w1, b1, w2, b2)            # one-time cast + pad

    y = mlp_forward(x, params)
    jax.block_until_ready(y)
    assert y.shape == (batch, seq, out_dim)
    y_ref_bf16 = mlp_reference(x, w1, b1, w2, b2, matmul_dtype=jnp.bfloat16)
    assert jnp.allclose(y, y_ref_bf16, atol=2e-3, rtol=2e-3)
    y_ref_f32 = mlp_reference(x, w1, b1, w2, b2, matmul_dtype=jnp.float32)
    assert jnp.allclose(y, y_ref_f32, atol=5e-2, rtol=5e-2)

    # --- Ragged row count (non-multiple-of-16), full-dim row block --------- #
    x2 = jax.random.normal(kx2, (3, 5, in_dim), jnp.float32)
    y2 = mlp_forward(x2, params)
    jax.block_until_ready(y2)
    assert y2.shape == (3, 5, out_dim)
    y2_ref = mlp_reference(x2, w1, b1, w2, b2, matmul_dtype=jnp.bfloat16)
    assert jnp.allclose(y2, y2_ref, atol=2e-3, rtol=2e-3)

    # --- 128-aligned dims (no-pad fast path), masked partial last row block,
    #     and the hidden-chunked reduction path ----------------------------- #
    in2, hid2, out2 = 128, 256, 128
    x3 = jax.random.normal(kx, (40, in2), jnp.float32)     # 40 rows, tm=16 -> 3 blocks
    w1b, b1b, w2b, b2b = init_mlp_params(kp2, in2, hid2, out2)
    params_b = prepare_mlp_params(w1b, b1b, w2b, b2b)

    y3 = mlp_forward(x3, params_b, tm=16)                                  # resident
    y3c = mlp_forward(x3, params_b, tm=16, force_chunked=True, chunk=128)  # 2 chunks
    jax.block_until_ready((y3, y3c))
    ref3 = mlp_reference(x3, w1b, b1b, w2b, b2b, matmul_dtype=jnp.bfloat16)
    assert y3.shape == (40, out2) and y3c.shape == (40, out2)
    assert jnp.allclose(y3, ref3, atol=1e-2, rtol=1e-2)
    assert jnp.allclose(y3c, ref3, atol=1e-2, rtol=1e-2)
    assert jnp.allclose(y3, y3c, atol=1e-3, rtol=1e-3)     # chunking ~exact (f32 acc)

    print("KERNEL_OK")
</pallas_src>

<mosaic_0001>
module attributes {stable_mosaic.version = 11 : i64} {
  func.func @_mlp_resident_kernel(%arg0: i32, %arg1: memref<16x128xf32, #tpu.memory_space<vmem>>, %arg2: memref<128x128xbf16, #tpu.memory_space<vmem>>, %arg3: memref<1x128xf32, #tpu.memory_space<vmem>>, %arg4: memref<128x128xbf16, #tpu.memory_space<vmem>>, %arg5: memref<1x128xf32, #tpu.memory_space<vmem>>, %arg6: memref<16x128xf32, #tpu.memory_space<vmem>>) attributes {dimension_semantics = [#tpu.dimension_semantics<parallel>], iteration_bounds = array<i64: 1>, scalar_prefetch = 0 : i64, scratch_operands = 0 : i64, tpu.core_type = #tpu.core_type<tc>, window_params = [{transform_indices = @transform_0, window_bounds = array<i64: 16, 128>}, {pipeline_mode = #tpu.pipeline_mode<synchronous>, transform_indices = @transform_1, window_bounds = array<i64: 128, 128>}, {pipeline_mode = #tpu.pipeline_mode<synchronous>, transform_indices = @transform_2, window_bounds = array<i64: 1, 128>}, {pipeline_mode = #tpu.pipeline_mode<synchronous>, transform_indices = @transform_3, window_bounds = array<i64: 128, 128>}, {pipeline_mode = #tpu.pipeline_mode<synchronous>, transform_indices = @transform_4, window_bounds = array<i64: 1, 128>}, {transform_indices = @transform_5, window_bounds = array<i64: 16, 128>}]} {
    %c0 = arith.constant 0 : index
    %c0_0 = arith.constant 0 : index
    %0 = vector.load %arg1[%c0, %c0_0] : memref<16x128xf32, #tpu.memory_space<vmem>>, vector<16x128xf32>
    %1 = arith.truncf %0 : vector<16x128xf32> to vector<16x128xbf16>
    %c0_1 = arith.constant 0 : index
    %c0_2 = arith.constant 0 : index
    %2 = vector.load %arg2[%c0_1, %c0_2] : memref<128x128xbf16, #tpu.memory_space<vmem>>, vector<128x128xbf16>
    %cst = arith.constant dense<0.000000e+00> : vector<16x128xf32>
    %3 = tpu.matmul %1, %2, %cst {dimension_numbers = #tpu.dot_dimension_numbers<[1], [0], [0], [1], [0, 0, 1, 1], [], []>} : vector<16x128xbf16>, vector<128x128xbf16>, vector<16x128xf32> -> vector<16x128xf32>
    %c0_3 = arith.constant 0 : index
    %c0_4 = arith.constant 0 : index
    %4 = vector.load %arg3[%c0_3, %c0_4] : memref<1x128xf32, #tpu.memory_space<vmem>>, vector<1x128xf32>
    %5 = vector.broadcast %4 : vector<1x128xf32> to vector<16x128xf32>
    %6 = arith.addf %3, %5 : vector<16x128xf32>
    %cst_5 = arith.constant 0.000000e+00 : f32
    %7 = vector.broadcast %cst_5 : f32 to vector<16x128xf32>
    %8 = arith.maximumf %6, %7 : vector<16x128xf32>
    %9 = arith.truncf %8 : vector<16x128xf32> to vector<16x128xbf16>
    %c0_6 = arith.constant 0 : index
    %c0_7 = arith.constant 0 : index
    %10 = vector.load %arg4[%c0_6, %c0_7] : memref<128x128xbf16, #tpu.memory_space<vmem>>, vector<128x128xbf16>
    %cst_8 = arith.constant dense<0.000000e+00> : vector<16x128xf32>
    %11 = tpu.matmul %9, %10, %cst_8 {dimension_numbers = #tpu.dot_dimension_numbers<[1], [0], [0], [1], [0, 0, 1, 1], [], []>} : vector<16x128xbf16>, vector<128x128xbf16>, vector<16x128xf32> -> vector<16x128xf32>
    %c0_9 = arith.constant 0 : index
    %c0_10 = arith.constant 0 : index
    %12 = vector.load %arg5[%c0_9, %c0_10] : memref<1x128xf32, #tpu.memory_space<vmem>>, vector<1x128xf32>
    %13 = vector.broadcast %12 : vector<1x128xf32> to vector<16x128xf32>
    %14 = arith.addf %11, %13 : vector<16x128xf32>
    %cst_11 = arith.constant 0.000000e+00 : f32
    %15 = vector.broadcast %cst_11 : f32 to vector<16x128xf32>
    %16 = arith.maximumf %14, %15 : vector<16x128xf32>
    %c0_12 = arith.constant 0 : index
    %c0_13 = arith.constant 0 : index
    %17 = vector.load %arg6[%c0_12, %c0_13] : memref<16x128xf32, #tpu.memory_space<vmem>>, vector<16x128xf32>
    tpu.vector_store %arg6[%c0_12, %c0_13], %16 {strides = array<i32>} : memref<16x128xf32, #tpu.memory_space<vmem>>, vector<16x128xf32>,
    return
  }
  func.func @transform_0(%arg0: i32) -> (i32, i32) {
    %c0_i32 = arith.constant 0 : i32
    %c0_i32_0 = arith.constant 0 : i32
    return %arg0, %c0_i32 : i32, i32
  }
  func.func @transform_1(%arg0: i32) -> (i32, i32) {
    %c0_i32 = arith.constant 0 : i32
    %c0_i32_0 = arith.constant 0 : i32
    %c0_i32_1 = arith.constant 0 : i32
    return %c0_i32, %c0_i32_0 : i32, i32
  }
  func.func @transform_2(%arg0: i32) -> (i32, i32) {
    %c0_i32 = arith.constant 0 : i32
    %c0_i32_0 = arith.constant 0 : i32
    %c0_i32_1 = arith.constant 0 : i32
    return %c0_i32, %c0_i32_0 : i32, i32
  }
  func.func @transform_3(%arg0: i32) -> (i32, i32) {
    %c0_i32 = arith.constant 0 : i32
    %c0_i32_0 = arith.constant 0 : i32
    %c0_i32_1 = arith.constant 0 : i32
    return %c0_i32, %c0_i32_0 : i32, i32
  }
  func.func @transform_4(%arg0: i32) -> (i32, i32) {
    %c0_i32 = arith.constant 0 : i32
    %c0_i32_0 = arith.constant 0 : i32
    %c0_i32_1 = arith.constant 0 : i32
    return %c0_i32, %c0_i32_0 : i32, i32
  }
  func.func @transform_5(%arg0: i32) -> (i32, i32) {
    %c0_i32 = arith.constant 0 : i32
    %c0_i32_0 = arith.constant 0 : i32
    return %arg0, %c0_i32 : i32, i32
  }
}

</mosaic_0001>

<llo_original>
// kernel: tpu_custom_call.1
$region0: #{tpu_custom_call.1}
  #allocation0 [shape = 'u32[]', space=smem, size = 0x4, offset = 0x4, fixed_abs, tag = 'smem constant byte address 0x4 - core index']
  #allocation1 [shape = 'u32[144,128]{1,0:T(1,128)}', space=vmem, size = 0x12000, scoped, tag = 'internal scratch']
  %s0 = inlined_call_operand.hbm [shape: f32[16,128], index: 0, kind: input, shape index: {}]
  %s1 = inlined_call_operand.hbm [shape: bf16[128,128], index: 1, kind: input, shape index: {}]
  %s2 = inlined_call_operand.vmem [shape: f32[1,128], index: 2, kind: input, shape index: {}]
  %s3 = inlined_call_operand.hbm [shape: bf16[128,128], index: 3, kind: input, shape index: {}]
  %s4 = inlined_call_operand.vmem [shape: f32[1,128], index: 4, kind: input, shape index: {}]
  %s5 = inlined_call_operand.hbm [shape: f32[16,128], index: 5, kind: output, shape index: {}]
  %s6 = sld [smem:[#allocation0]]
  $region42: #{tpu_custom_call.1} parent=0
    _
  %s8 = ssub.s32 1, %s6
  %s9 = scalar_select 0, %s8, %s6
  $region1: #{tpu_custom_call.1} parent=0
    #allocation2 [shape = 'u8[8192]{0}', space=vmem, size = 0x2000, scoped, tag = 'input window, operand 0, single buffered']
    #allocation3 [shape = 's32[1]{0}', space=sflag, size = 0x4, scoped, tag = 'scoped memory for tpu_custom_call.1']
    #allocation4 [shape = 's32[1]{0}', space=sflag, size = 0x4, scoped, tag = 'scoped memory for tpu_custom_call.1']
    #allocation5 [shape = 'u8[32768]{0}', space=vmem, size = 0x8000, scoped, tag = 'input window, operand 1, single buffered']
    #allocation6 [shape = 's32[1]{0}', space=sflag, size = 0x4, scoped, tag = 'scoped memory for tpu_custom_call.1']
    #allocation7 [shape = 'u8[32768]{0}', space=vmem, size = 0x8000, scoped, tag = 'input window, operand 3, single buffered']
    #allocation8 [shape = 'u8[8192]{0}', space=vmem, size = 0x2000, scoped, tag = 'output window, operand 0, single buffered']
    %10 = vsyncpa [#allocation3], 0
    %11 = vsyncpa [#allocation6], 0
    %12 = vsyncpa [#allocation4], 0
    // Predicated region
    $region2: #{tpu_custom_call.1} parent=1 // pred_check
      _
    $region3: #{tpu_custom_call.1} parent=1 // pred_check_branch
      %14 = sbr.rel (0) target = $region5
    $region4: #{tpu_custom_call.1} parent=1 // pred_region
      %s16 = ssub.s32 256, 256
      %17 = vsyncadd [#allocation3], %s16
      %s18 = sshll.u32 [#allocation2], 4
      %s19 = int_to_ptr.vmem [resolvable:$true] %s18
      %24 = dma.hbm_to_vmem [thread:$0]  %s0, 256, %s19, [#allocation3], 128, 128, 8
    $region5: #{tpu_custom_call.1} parent=1 // pred_fallthru
      _
    // Predicated region
    $region6: #{tpu_custom_call.1} parent=1 // pred_check
      _
    $region7: #{tpu_custom_call.1} parent=1 // pred_check_branch
      %26 = sbr.rel (0) target = $region9
    $region8: #{tpu_custom_call.1} parent=1 // pred_region
      %s28 = ssub.s32 1024, 1024
      %29 = vsyncadd [#allocation6], %s28
      %s30 = sshll.u32 [#allocation5], 4
      %s31 = int_to_ptr.vmem [resolvable:$true] %s30
      %36 = dma.hbm_to_vmem [thread:$0]  %s1, 1024, %s31, [#allocation6], 64, 64, 4
    $region9: #{tpu_custom_call.1} parent=1 // pred_fallthru
      _
    // Predicated region
    $region10: #{tpu_custom_call.1} parent=1 // pred_check
      _
    $region11: #{tpu_custom_call.1} parent=1 // pred_check_branch
      %38 = sbr.rel (0) target = $region13
    $region12: #{tpu_custom_call.1} parent=1 // pred_region
      _
    $region13: #{tpu_custom_call.1} parent=1 // pred_fallthru
      _
    // Predicated region
    $region14: #{tpu_custom_call.1} parent=1 // pred_check
      _
    $region15: #{tpu_custom_call.1} parent=1 // pred_check_branch
      %40 = sbr.rel (0) target = $region17
    $region16: #{tpu_custom_call.1} parent=1 // pred_region
      %s42 = ssub.s32 1024, 1024
      %43 = vsyncadd [#allocation6], %s42
      %s44 = sshll.u32 [#allocation7], 4
      %s45 = int_to_ptr.vmem [resolvable:$true] %s44
      %50 = dma.hbm_to_vmem [thread:$0]  %s3, 1024, %s45, [#allocation6], 64, 64, 4
    $region17: #{tpu_custom_call.1} parent=1 // pred_fallthru
      _
    // Predicated region
    $region18: #{tpu_custom_call.1} parent=1 // pred_check
      _
    $region19: #{tpu_custom_call.1} parent=1 // pred_check_branch
      %52 = sbr.rel (0) target = $region21
    $region20: #{tpu_custom_call.1} parent=1 // pred_region
      _
    $region21: #{tpu_custom_call.1} parent=1 // pred_fallthru
      _
    // Predicated region
    $region22: #{tpu_custom_call.1} parent=1 // pred_check
      _
    $region23: #{tpu_custom_call.1} parent=1 // pred_check_branch
      %54 = sbr.rel (0) target = $region25
    $region24: #{tpu_custom_call.1} parent=1 // pred_region
      %55 = dma.done [#allocation3], 256
    $region25: #{tpu_custom_call.1} parent=1 // pred_fallthru
      _
    // Predicated region
    $region26: #{tpu_custom_call.1} parent=1 // pred_check
      _
    $region27: #{tpu_custom_call.1} parent=1 // pred_check_branch
      %57 = sbr.rel (0) target = $region29
    $region28: #{tpu_custom_call.1} parent=1 // pred_region
      %58 = dma.done [#allocation6], 1024
    $region29: #{tpu_custom_call.1} parent=1 // pred_fallthru
      _
    // Predicated region
    $region30: #{tpu_custom_call.1} parent=1 // pred_check
      _
    $region31: #{tpu_custom_call.1} parent=1 // pred_check_branch
      %60 = sbr.rel (0) target = $region33
    $region32: #{tpu_custom_call.1} parent=1 // pred_region
      %61 = dma.done [#allocation6], 1024
    $region33: #{tpu_custom_call.1} parent=1 // pred_fallthru
      _
    %v63 = vld [vmem:[#allocation2] sm:$0xff]
    %v64 = vld [vmem:[#allocation2 + $0x8] sm:$0xff]
    %v65 = vpack.c.bf16 %v64, %v63
    %v66 = vld [vmem:[#allocation5] sm:$0xf]
    %v67 = vld [vmem:[#allocation5 + $0x4] sm:$0xf]
    %v68 = vld [vmem:[#allocation5 + $0x8] sm:$0xf]
    %v69 = vld [vmem:[#allocation5 + $0xc] sm:$0xf]
    %v70 = vld [vmem:[#allocation5 + $0x10] sm:$0xf]
    %v71 = vld [vmem:[#allocation5 + $0x14] sm:$0xf]
    %v72 = vld [vmem:[#allocation5 + $0x18] sm:$0xf]
    %v73 = vld [vmem:[#allocation5 + $0x1c] sm:$0xf]
    %v74 = vld [vmem:[#allocation5 + $0x20] sm:$0xf]
    %v75 = vld [vmem:[#allocation5 + $0x24] sm:$0xf]
    %v76 = vld [vmem:[#allocation5 + $0x28] sm:$0xf]
    %v77 = vld [vmem:[#allocation5 + $0x2c] sm:$0xf]
    %v78 = vld [vmem:[#allocation5 + $0x30] sm:$0xf]
    %v79 = vld [vmem:[#allocation5 + $0x34] sm:$0xf]
    %v80 = vld [vmem:[#allocation5 + $0x38] sm:$0xf]
    %v81 = vld [vmem:[#allocation5 + $0x3c] sm:$0xf]
    %v82 = vld [vmem:[%s2] sm:$0x1]
    %v84 = vlaneseq
    %v85 = vshrl.u32 %v84, 7
    %v86 = vsub.s32 0, %v85
    %v87 = vrot.slane %v82, %v86
    %v105 = vunpack.c.l.b16 %v66
    %v106 = vunpack.c.l.b16 %v67
    %v107 = vunpack.c.l.b16 %v68
    %v108 = vunpack.c.l.b16 %v69
    %v109 = vunpack.c.l.b16 %v70
    %v110 = vunpack.c.l.b16 %v71
    %v111 = vunpack.c.l.b16 %v72
    %v112 = vunpack.c.l.b16 %v73
    %v113 = vunpack.c.l.b16 %v74
    %v114 = vunpack.c.l.b16 %v75
    %v115 = vunpack.c.l.b16 %v76
    %v116 = vunpack.c.l.b16 %v77
    %v117 = vunpack.c.l.b16 %v78
    %v118 = vunpack.c.l.b16 %v79
    %v119 = vunpack.c.l.b16 %v80
    %v120 = vunpack.c.l.b16 %v81
    %v121 = vpack.c.b16 %v106, %v105
    %v122 = vpack.c.b16 %v108, %v107
    %v123 = vpack.c.b16 %v110, %v109
    %v124 = vpack.c.b16 %v112, %v111
    %v125 = vpack.c.b16 %v114, %v113
    %v126 = vpack.c.b16 %v116, %v115
    %v127 = vpack.c.b16 %v118, %v117
    %v128 = vpack.c.b16 %v120, %v119
    %137 = vmatprep.subr.bf16.mxu0 0
    %138 = vmatpush1.bf16.msra.mxu0 %v128
    %139 = vmatprep.subr.bf16.mxu0 0
    %140 = vmatpush1.bf16.msra.mxu0 %v127
    %141 = vmatprep.subr.bf16.mxu0 0
    %142 = vmatpush1.bf16.msra.mxu0 %v126
    %143 = vmatprep.subr.bf16.mxu0 0
    %144 = vmatpush1.bf16.msra.mxu0 %v125
    %145 = vmatprep.subr.bf16.mxu0 0
    %146 = vmatpush1.bf16.msra.mxu0 %v124
    %147 = vmatprep.subr.bf16.mxu0 0
    %148 = vmatpush1.bf16.msra.mxu0 %v123
    %149 = vmatprep.subr.bf16.mxu0 0
    %150 = vmatpush1.bf16.msra.mxu0 %v122
    %151 = vmatprep.subr.bf16.mxu0 0
    %152 = vmatpush1.bf16.msra.mxu0 %v121
    %153 = vmatprep.subr.bf16.mxu0 0
    %154 = vmatpush2.bf16.msra.mxu0 0
    %155 = vmatprep.subr.bf16.mxu0 0
    %156 = vmatpush2.bf16.msra.mxu0 0
    %157 = vmatprep.subr.bf16.mxu0 0
    %158 = vmatpush2.bf16.msra.mxu0 0
    %159 = vmatprep.subr.bf16.mxu0 0
    %160 = vmatpush2.bf16.msra.mxu0 0
    %161 = vmatprep.subr.bf16.mxu0 0
    %162 = vmatpush2.bf16.msra.mxu0 0
    %163 = vmatprep.subr.bf16.mxu0 0
    %164 = vmatpush2.bf16.msra.mxu0 0
    %165 = vmatprep.subr.bf16.mxu0 0
    %166 = vmatpush2.bf16.msra.mxu0 0
    %167 = vmatprep.subr.bf16.mxu0 0
    %168 = vmatpush2.bf16.msra.mxu0 0
    %169 = vmatprep.mubr.bf16.mxu0 0
    %170 = vmatmul.mubr.bf16.gmra.mxu0 %v65
    %v171 = vpop.f32.mrf.mxu0
    %v172 = vadd.f32 %v87, %v171
    %v173 = vpop.f32.mrf.mxu0
    %v174 = vpop.f32.mrf.mxu0
    %v175 = vadd.f32 %v87, %v174
    %v176 = vpop.f32.mrf.mxu0
    %177 = vdwg.mxu0
    %v178 = vmax.f32 %v172, 0.0
    %v179 = vmax.f32 %v175, 0.0
    %v180 = vpack.c.bf16 %v179, %v178
    %v181 = vld [vmem:[#allocation7] sm:$0xf]
    %v182 = vld [vmem:[#allocation7 + $0x4] sm:$0xf]
    %v183 = vld [vmem:[#allocation7 + $0x8] sm:$0xf]
    %v184 = vld [vmem:[#allocation7 + $0xc] sm:$0xf]
    %v185 = vld [vmem:[#allocation7 + $0x10] sm:$0xf]
    %v186 = vld [vmem:[#allocation7 + $0x14] sm:$0xf]
    %v187 = vld [vmem:[#allocation7 + $0x18] sm:$0xf]
    %v188 = vld [vmem:[#allocation7 + $0x1c] sm:$0xf]
    %v189 = vld [vmem:[#allocation7 + $0x20] sm:$0xf]
    %v190 = vld [vmem:[#allocation7 + $0x24] sm:$0xf]
    %v191 = vld [vmem:[#allocation7 + $0x28] sm:$0xf]
    %v192 = vld [vmem:[#allocation7 + $0x2c] sm:$0xf]
    %v193 = vld [vmem:[#allocation7 + $0x30] sm:$0xf]
    %v194 = vld [vmem:[#allocation7 + $0x34] sm:$0xf]
    %v195 = vld [vmem:[#allocation7 + $0x38] sm:$0xf]
    %v196 = vld [vmem:[#allocation7 + $0x3c] sm:$0xf]
    %v197 = vld [vmem:[%s4] sm:$0x1]
    %v199 = vlaneseq
    %v200 = vshrl.u32 %v199, 7
    %v201 = vsub.s32 0, %v200
    %v202 = vrot.slane %v197, %v201
    %v220 = vunpack.c.l.b16 %v181
    %v221 = vunpack.c.l.b16 %v182
    %v222 = vunpack.c.l.b16 %v183
    %v223 = vunpack.c.l.b16 %v184
    %v224 = vunpack.c.l.b16 %v185
    %v225 = vunpack.c.l.b16 %v186
    %v226 = vunpack.c.l.b16 %v187
    %v227 = vunpack.c.l.b16 %v188
    %v228 = vunpack.c.l.b16 %v189
    %v229 = vunpack.c.l.b16 %v190
    %v230 = vunpack.c.l.b16 %v191
    %v231 = vunpack.c.l.b16 %v192
    %v232 = vunpack.c.l.b16 %v193
    %v233 = vunpack.c.l.b16 %v194
    %v234 = vunpack.c.l.b16 %v195
    %v235 = vunpack.c.l.b16 %v196
    %v236 = vpack.c.b16 %v221, %v220
    %v237 = vpack.c.b16 %v223, %v222
    %v238 = vpack.c.b16 %v225, %v224
    %v239 = vpack.c.b16 %v227, %v226
    %v240 = vpack.c.b16 %v229, %v228
    %v241 = vpack.c.b16 %v231, %v230
    %v242 = vpack.c.b16 %v233, %v232
    %v243 = vpack.c.b16 %v235, %v234
    %252 = vmatprep.subr.bf16.mxu0 0
    %253 = vmatpush1.bf16.msra.mxu0 %v243
    %254 = vmatprep.subr.bf16.mxu0 0
    %255 = vmatpush1.bf16.msra.mxu0 %v242
    %256 = vmatprep.subr.bf16.mxu0 0
    %257 = vmatpush1.bf16.msra.mxu0 %v241
    %258 = vmatprep.subr.bf16.mxu0 0
    %259 = vmatpush1.bf16.msra.mxu0 %v240
    %260 = vmatprep.subr.bf16.mxu0 0
    %261 = vmatpush1.bf16.msra.mxu0 %v239
    %262 = vmatprep.subr.bf16.mxu0 0
    %263 = vmatpush1.bf16.msra.mxu0 %v238
    %264 = vmatprep.subr.bf16.mxu0 0
    %265 = vmatpush1.bf16.msra.mxu0 %v237
    %266 = vmatprep.subr.bf16.mxu0 0
    %267 = vmatpush1.bf16.msra.mxu0 %v236
    %268 = vmatprep.subr.bf16.mxu0 0
    %269 = vmatpush2.bf16.msra.mxu0 0
    %270 = vmatprep.subr.bf16.mxu0 0
    %271 = vmatpush2.bf16.msra.mxu0 0
    %272 = vmatprep.subr.bf16.mxu0 0
    %273 = vmatpush2.bf16.msra.mxu0 0
    %274 = vmatprep.subr.bf16.mxu0 0
    %275 = vmatpush2.bf16.msra.mxu0 0
    %276 = vmatprep.subr.bf16.mxu0 0
    %277 = vmatpush2.bf16.msra.mxu0 0
    %278 = vmatprep.subr.bf16.mxu0 0
    %279 = vmatpush2.bf16.msra.mxu0 0
    %280 = vmatprep.subr.bf16.mxu0 0
    %281 = vmatpush2.bf16.msra.mxu0 0
    %282 = vmatprep.subr.bf16.mxu0 0
    %283 = vmatpush2.bf16.msra.mxu0 0
    %284 = vmatprep.mubr.bf16.mxu0 0
    %285 = vmatmul.mubr.bf16.gmra.mxu0 %v180
    %v286 = vpop.f32.mrf.mxu0
    %v287 = vadd.f32 %v202, %v286
    %v288 = vpop.f32.mrf.mxu0
    %v289 = vpop.f32.mrf.mxu0
    %v290 = vadd.f32 %v202, %v289
    %v291 = vpop.f32.mrf.mxu0
    %292 = vdwg.mxu0
    %v293 = vmax.f32 %v287, 0.0
    %v294 = vmax.f32 %v290, 0.0
    %295 = vst [vmem:[#allocation8] sm:$0xff] %v293
    %296 = vst [vmem:[#allocation8 + $0x8] sm:$0xff] %v294
    // Predicated region
    $region34: #{tpu_custom_call.1} parent=1 // pred_check
      _
    $region35: #{tpu_custom_call.1} parent=1 // pred_check_branch
      %298 = sbr.rel (0) target = $region37
    $region36: #{tpu_custom_call.1} parent=1 // pred_region
      %s300 = ssub.s32 256, 256
      %301 = vsyncadd [#allocation4], %s300
      %s302 = sshll.u32 [#allocation8], 4
      %s303 = int_to_ptr.vmem [resolvable:$true] %s302
      %308 = dma.vmem_to_hbm [thread:$0]  %s303, 256, %s5, [#allocation4], 128, 128, 8
    $region37: #{tpu_custom_call.1} parent=1 // pred_fallthru
      _
    // Predicated region
    $region38: #{tpu_custom_call.1} parent=1 // pred_check
      _
    $region39: #{tpu_custom_call.1} parent=1 // pred_check_branch
      %310 = sbr.rel (0) target = $region41
    $region40: #{tpu_custom_call.1} parent=1 // pred_region
      %311 = dma.done [#allocation4], 256
    $region41: #{tpu_custom_call.1} parent=1 // pred_fallthru
      _
    %312 = vsyncpa [#allocation3], 1
    %313 = vsyncpa [#allocation6], 1
    %314 = vsyncpa [#allocation4], 1

</llo_original>
